<compile_context>
chip_gen: v7x
topology: tpu7x:2x2x1
jax: 0.10.0
libtpu: 0.0.40
codegen_flags: <defaults>
</compile_context>

<pallas_src>
import math

import jax
import jax.numpy as jnp
from jax.experimental import pallas as pl
from jax.experimental.pallas import tpu as pltpu


def _tda_kernel(x_ref, w_ref, o_ref):
    # (rows, lanes) * (1, lanes) broadcast multiply in float32 -- pure VPU
    # work, no transcendentals in the kernel.
    o_ref[...] = (x_ref[...].astype(w_ref.dtype) * w_ref[...]).astype(o_ref.dtype)


def _target_block_bytes():
    """Per-generation x-block size for this HBM-bandwidth-bound op."""
    try:
        kind = jax.devices()[0].device_kind.lower()
    except Exception:
        return 4 * 1024 * 1024
    if "v5 lite" in kind or "v5e" in kind or "v5litepod" in kind:
        return 2 * 1024 * 1024      # keeps double-buffered blocks small on v5e
    if "v7" in kind:
        return 8 * 1024 * 1024      # ~3.2 TB/s HBM: amortize per-step overhead
    return 4 * 1024 * 1024          # v6e and everything else


def _find_lane_fold(R, T, max_fold_lanes):
    """Pick a row-group size G (divisor of R) to fold into the lane axis.

    Preferred: smallest G with (G*T) % 128 == 0 -> lane-dense stores.
    Fallback (only for lane-sparse T < 128): any fold that widens the lanes.
    """
    if R <= 1 or T % 128 == 0:
        return 1
    g0 = 128 // math.gcd(T, 128)
    g = g0
    while g <= R and g * T <= max_fold_lanes:
        if R % g == 0:
            return g
        g += g0
    if T < 128:
        best = 1
        g = 2
        while g <= R and g * T <= max_fold_lanes:
            if R % g == 0:
                best = g
            g += 1
        return best
    return 1


def tda_forward(x, *, time_window, scaling_factor,
                target_block_bytes=None,
                max_lane_block=2048, max_fold_lanes=8192):
    """x: (B, C, T) -> (B, C, T), out = x * scaling_factor * exp(-t/time_window)."""
    B, C, T = x.shape
    out_dtype = jnp.result_type(x.dtype, jnp.float32)   # match torch promotion

    if x.size == 0:
        t = jnp.arange(T, dtype=jnp.float32)
        w = scaling_factor * jnp.exp(-t / time_window)
        return (x.astype(out_dtype) * w.reshape(1, 1, -1)).astype(out_dtype)

    if target_block_bytes is None:
        target_block_bytes = _target_block_bytes()

    R = B * C
    x_item = jnp.dtype(x.dtype).itemsize
    out_item = jnp.dtype(out_dtype).itemsize

    # ---- Lane folding: widen the lane axis so stores are lane-dense. ------
    G = _find_lane_fold(R, T, max_fold_lanes)
    L = G * T
    Rr = R // G
    x2 = x.reshape(Rr, L)

    # ---- Decay weights: computed ONCE (T exps total, outside the kernel). -
    t = jnp.arange(T, dtype=jnp.float32)
    w = (scaling_factor * jnp.exp(-t / time_window)).astype(jnp.float32)
    w_row = jnp.tile(w, G).reshape(1, L)          # repeats with period T

    # ---- Lane block: multiple of 128 whenever possible. -------------------
    if L % 128 == 0:
        l_block = min(L, max_lane_block)
    elif L <= max_lane_block:
        l_block = L                                # full extent (allowed)
    else:
        l_block = max_lane_block                   # ragged last block masked

    # ---- Row block: fixed multiple-of-8 target + cdiv grid (no padding). --
    if Rr < 8:
        r_block = Rr                               # full extent
    else:
        target_rows = max(8, (target_block_bytes // (l_block * x_item)) // 8 * 8)
        r_block = min(target_rows, (Rr // 8) * 8)
        # v7x megacore: keep >= 2 grid steps on a parallel axis when the
        # input is big enough to be worth splitting across two TensorCores.
        if (pl.cdiv(L, l_block) * pl.cdiv(Rr, r_block) < 2
                and Rr >= 16 and Rr * L * x_item >= (1 << 20)):
            r_block = max(8, ((pl.cdiv(Rr, 2) + 7) // 8) * 8)

    # Lanes are the major (outer) axis so the weight block is not re-indexed
    # on every minor step; rows are the minor (inner) axis.
    grid = (pl.cdiv(L, l_block), pl.cdiv(Rr, r_block))

    # ---- Scoped-VMEM budget: double-buffered in + out + weight blocks. ----
    blk = r_block * l_block
    needed = 2 * (blk * x_item + blk * out_item + l_block * 4)
    vmem_limit = int(min(64 * 1024 * 1024,
                         max(24 * 1024 * 1024, needed + 8 * 1024 * 1024)))

    out2 = pl.pallas_call(
        _tda_kernel,
        out_shape=jax.ShapeDtypeStruct((Rr, L), out_dtype),
        grid=grid,
        in_specs=[
            pl.BlockSpec((r_block, l_block), lambda j, i: (i, j)),
            pl.BlockSpec((1, l_block), lambda j, i: (0, j)),
        ],
        out_specs=pl.BlockSpec((r_block, l_block), lambda j, i: (i, j)),
        compiler_params=pltpu.CompilerParams(
            dimension_semantics=("parallel", "parallel"),
            vmem_limit_bytes=vmem_limit,
        ),
    )(x2, w_row)

    return out2.reshape(B, C, T)


def tda_reference(x, *, time_window, scaling_factor):
    t = jnp.arange(x.shape[2], dtype=jnp.float32)
    w = scaling_factor * jnp.exp(-t / time_window)
    return x.astype(jnp.result_type(x.dtype, jnp.float32)) * w.reshape(1, 1, -1)


if __name__ == "__main__":
    key = jax.random.PRNGKey(0)
    time_window = 5.0
    scaling_factor = 2.0

    # Exercise the layout paths: 128-aligned lane fold (small T), 128-aligned
    # large T, and the ragged-row / ragged-T path (partial cdiv blocks).
    shapes = [(2, 4, 16), (2, 8, 256), (9, 1, 200)]
    for idx, (B, C, T) in enumerate(shapes):
        k = jax.random.fold_in(key, idx)
        x = jax.random.normal(k, (B, C, T), dtype=jnp.float32)
        out = tda_forward(x, time_window=time_window,
                          scaling_factor=scaling_factor)
        out = jax.block_until_ready(out)
        ref = tda_reference(x, time_window=time_window,
                            scaling_factor=scaling_factor)
        assert out.shape == (B, C, T)
        assert jnp.allclose(out, ref, atol=1e-5, rtol=1e-5), \
            f"mismatch vs reference for shape {(B, C, T)}"

    print("KERNEL_OK")
</pallas_src>

<mosaic_0001>
module attributes {stable_mosaic.version = 11 : i64} {
  func.func @_tda_kernel(%arg0: i32, %arg1: i32, %arg2: memref<1x128xf32, #tpu.memory_space<vmem>>, %arg3: memref<1x128xf32, #tpu.memory_space<vmem>>, %arg4: memref<1x128xf32, #tpu.memory_space<vmem>>) attributes {dimension_semantics = [#tpu.dimension_semantics<parallel>, #tpu.dimension_semantics<parallel>], iteration_bounds = array<i64: 1, 1>, scalar_prefetch = 0 : i64, scratch_operands = 0 : i64, tpu.core_type = #tpu.core_type<tc>, window_params = [{transform_indices = @transform_0, window_bounds = array<i64: 1, 128>}, {transform_indices = @transform_1, window_bounds = array<i64: 1, 128>}, {transform_indices = @transform_2, window_bounds = array<i64: 1, 128>}]} {
    %c0 = arith.constant 0 : index
    %c0_0 = arith.constant 0 : index
    %0 = vector.load %arg2[%c0, %c0_0] : memref<1x128xf32, #tpu.memory_space<vmem>>, vector<1x128xf32>
    %c0_1 = arith.constant 0 : index
    %c0_2 = arith.constant 0 : index
    %1 = vector.load %arg3[%c0_1, %c0_2] : memref<1x128xf32, #tpu.memory_space<vmem>>, vector<1x128xf32>
    %2 = arith.mulf %0, %1 : vector<1x128xf32>
    %c0_3 = arith.constant 0 : index
    %c0_4 = arith.constant 0 : index
    %3 = vector.load %arg4[%c0_3, %c0_4] : memref<1x128xf32, #tpu.memory_space<vmem>>, vector<1x128xf32>
    tpu.vector_store %arg4[%c0_3, %c0_4], %2 {strides = array<i32>} : memref<1x128xf32, #tpu.memory_space<vmem>>, vector<1x128xf32>,
    return
  }
  func.func @transform_0(%arg0: i32, %arg1: i32) -> (i32, i32) {
    %c0_i32 = arith.constant 0 : i32
    return %arg1, %arg0 : i32, i32
  }
  func.func @transform_1(%arg0: i32, %arg1: i32) -> (i32, i32) {
    %c0_i32 = arith.constant 0 : i32
    %c0_i32_0 = arith.constant 0 : i32
    return %c0_i32, %arg0 : i32, i32
  }
  func.func @transform_2(%arg0: i32, %arg1: i32) -> (i32, i32) {
    %c0_i32 = arith.constant 0 : i32
    return %arg1, %arg0 : i32, i32
  }
}

</mosaic_0001>

<llo_original>
// kernel: tpu_custom_call.1
$region0: #{tpu_custom_call.1}
  #allocation0 [shape = 'u32[]', space=smem, size = 0x4, offset = 0x4, fixed_abs, tag = 'smem constant byte address 0x4 - core index']
  #allocation1 [shape = 'u32[144,128]{1,0:T(1,128)}', space=vmem, size = 0x12000, scoped, tag = 'internal scratch']
  %s0 = inlined_call_operand.hbm [shape: f32[1,128], index: 0, kind: input, shape index: {}]
  %s1 = inlined_call_operand.vmem [shape: f32[1,128], index: 1, kind: input, shape index: {}]
  %s2 = inlined_call_operand.hbm [shape: f32[1,128], index: 2, kind: output, shape index: {}]
  %s3 = sld [smem:[#allocation0]]
  $region22: #{tpu_custom_call.1} parent=0
    _
  %s5 = ssub.s32 1, %s3
  %s6 = scalar_select 0, %s5, %s3
  $region1: #{tpu_custom_call.1} parent=0
    #allocation2 [shape = 'u8[512]{0}', space=vmem, size = 0x400, scoped, tag = 'input window, operand 0, single buffered']
    #allocation3 [shape = 's32[1]{0}', space=sflag, size = 0x4, scoped, tag = 'scoped memory for tpu_custom_call.1']
    #allocation4 [shape = 's32[1]{0}', space=sflag, size = 0x4, scoped, tag = 'scoped memory for tpu_custom_call.1']
    #allocation5 [shape = 'u8[512]{0}', space=vmem, size = 0x400, scoped, tag = 'output window, operand 0, single buffered']
    %7 = vsyncpa [#allocation3], 0
    %8 = vsyncpa [#allocation4], 0
    // Predicated region
    $region2: #{tpu_custom_call.1} parent=1 // pred_check
      _
    $region3: #{tpu_custom_call.1} parent=1 // pred_check_branch
      %10 = sbr.rel (0) target = $region5
    $region4: #{tpu_custom_call.1} parent=1 // pred_region
      %s12 = ssub.s32 16, 16
      %13 = vsyncadd [#allocation3], %s12
      %s15 = sshll.u32 [#allocation2], 4
      %s16 = int_to_ptr.vmem [resolvable:$true] %s15
      %18 = dma.hbm_to_vmem [thread:$0]  %s0, 16, %s16, [#allocation3]
    $region5: #{tpu_custom_call.1} parent=1 // pred_fallthru
      _
    // Predicated region
    $region6: #{tpu_custom_call.1} parent=1 // pred_check
      _
    $region7: #{tpu_custom_call.1} parent=1 // pred_check_branch
      %20 = sbr.rel (0) target = $region9
    $region8: #{tpu_custom_call.1} parent=1 // pred_region
      _
    $region9: #{tpu_custom_call.1} parent=1 // pred_fallthru
      _
    // Predicated region
    $region10: #{tpu_custom_call.1} parent=1 // pred_check
      _
    $region11: #{tpu_custom_call.1} parent=1 // pred_check_branch
      %22 = sbr.rel (0) target = $region13
    $region12: #{tpu_custom_call.1} parent=1 // pred_region
      %23 = dma.done [#allocation3], 16
    $region13: #{tpu_custom_call.1} parent=1 // pred_fallthru
      _
    %v24 = vld [vmem:[#allocation2] sm:$0x1]
    %v25 = vld [vmem:[%s1] sm:$0x1]
    %v26 = vmul.f32 %v24, %v25
    %27 = vst [vmem:[#allocation5] sm:$0x1] %v26
    // Predicated region
    $region14: #{tpu_custom_call.1} parent=1 // pred_check
      _
    $region15: #{tpu_custom_call.1} parent=1 // pred_check_branch
      %29 = sbr.rel (0) target = $region17
    $region16: #{tpu_custom_call.1} parent=1 // pred_region
      %s31 = ssub.s32 16, 16
      %32 = vsyncadd [#allocation4], %s31
      %s34 = sshll.u32 [#allocation5], 4
      %s35 = int_to_ptr.vmem [resolvable:$true] %s34
      %37 = dma.vmem_to_hbm [thread:$0]  %s35, 16, %s2, [#allocation4]
    $region17: #{tpu_custom_call.1} parent=1 // pred_fallthru
      _
    // Predicated region
    $region18: #{tpu_custom_call.1} parent=1 // pred_check
      _
    $region19: #{tpu_custom_call.1} parent=1 // pred_check_branch
      %39 = sbr.rel (0) target = $region21
    $region20: #{tpu_custom_call.1} parent=1 // pred_region
      %40 = dma.done [#allocation4], 16
    $region21: #{tpu_custom_call.1} parent=1 // pred_fallthru
      _
    %41 = vsyncpa [#allocation3], 1
    %42 = vsyncpa [#allocation4], 1

</llo_original>
